<compile_context>
chip_gen: v5e
topology: v5e:2x2
jax: 0.10.0
libtpu: 0.0.40
codegen_flags: <defaults>
</compile_context>

<pallas_src>
import jax
import jax.numpy as jnp
from jax.experimental import pallas as pl
from jax.experimental.pallas import tpu as pltpu


def _round_up(x, m):
    return ((x + m - 1) // m) * m


def mlp_kernel(x_ref, w1_ref, b1_ref, w2_ref, b2_ref, w3_ref, b3_ref, o_ref):
    # y = relu(relu(x @ W1 + b1) @ W2 + b2) @ W3 + b3, all in f32.
    h = jnp.dot(x_ref[...], w1_ref[...], preferred_element_type=jnp.float32)
    h = jnp.maximum(h + b1_ref[...], 0.0)
    h = jnp.dot(h, w2_ref[...], preferred_element_type=jnp.float32)
    h = jnp.maximum(h + b2_ref[...], 0.0)
    out = jnp.dot(h, w3_ref[...], preferred_element_type=jnp.float32) + b3_ref[...]
    o_ref[...] = out.astype(o_ref.dtype)


@jax.jit
def mlp_forward(x, w1, b1, w2, b2, w3, b3):
    batch, in_size = x.shape
    h1_size = w1.shape[1]
    h2_size = w2.shape[1]
    num_classes = w3.shape[1]

    # Batch tiling: a single step for small batches (everything is launch /
    # pipeline overhead there); otherwise 256..1024-row tiles (multiple of 256)
    # capped so the grid keeps >=4 steps for v7x megacore sharding.
    if batch <= 256:
        tile_m = batch                      # full-dim block: always legal
    else:
        tile_m = max(256, min(1024, _round_up(pl.cdiv(batch, 4), 256)))
    grid_m = pl.cdiv(batch, tile_m)

    resident = lambda i: (0, 0)             # same block every step -> stays in VMEM

    return pl.pallas_call(
        mlp_kernel,
        out_shape=jax.ShapeDtypeStruct((batch, num_classes), x.dtype),
        grid=(grid_m,),
        in_specs=[
            pl.BlockSpec((tile_m, in_size), lambda i: (i, 0)),   # x: tiled over batch
            pl.BlockSpec((in_size, h1_size), resident),          # w1
            pl.BlockSpec((1, h1_size), resident),                # b1
            pl.BlockSpec((h1_size, h2_size), resident),          # w2
            pl.BlockSpec((1, h2_size), resident),                # b2
            pl.BlockSpec((h2_size, num_classes), resident),      # w3
            pl.BlockSpec((1, num_classes), resident),            # b3
        ],
        out_specs=pl.BlockSpec((tile_m, num_classes), lambda i: (i, 0)),
        compiler_params=pltpu.CompilerParams(
            dimension_semantics=("parallel",),                   # megacore on v7x
        ),
    )(x, w1, b1, w2, b2, w3, b3)


def init_linear_params(key, in_features, out_features):
    # Mimic PyTorch nn.Linear default init: U(-1/sqrt(in), 1/sqrt(in)).
    kw, kb = jax.random.split(key)
    bound = 1.0 / jnp.sqrt(jnp.float32(in_features))
    # Weight stored as (in, out) -- transpose of PyTorch's (out, in) layout.
    w = jax.random.uniform(kw, (in_features, out_features), jnp.float32, -bound, bound)
    b = jax.random.uniform(kb, (1, out_features), jnp.float32, -bound, bound)
    return w, b


def ref_forward(x, w1, b1, w2, b2, w3, b3):
    h = jnp.maximum(x @ w1 + b1, 0.0)
    h = jnp.maximum(h @ w2 + b2, 0.0)
    return h @ w3 + b3


if __name__ == "__main__":
    in_size, h1_size, h2_size, num_classes = 32, 64, 48, 16

    key = jax.random.PRNGKey(0)
    kx, k1, k2, k3, kx2 = jax.random.split(key, 5)

    w1, b1 = init_linear_params(k1, in_size, h1_size)
    w2, b2 = init_linear_params(k2, h1_size, h2_size)
    w3, b3 = init_linear_params(k3, h2_size, num_classes)

    # Small batch: exercises the single-grid-step path (no padding anywhere).
    x = jax.random.normal(kx, (8, in_size), jnp.float32)
    out = jax.block_until_ready(mlp_forward(x, w1, b1, w2, b2, w3, b3))
    assert out.shape == (8, num_classes)
    ref = ref_forward(x, w1, b1, w2, b2, w3, b3)
    assert jnp.allclose(out, ref, atol=2e-2, rtol=2e-2), float(jnp.max(jnp.abs(out - ref)))

    # Larger ragged batch: exercises the multi-step grid + masked tail block.
    x2 = jax.random.normal(kx2, (260, in_size), jnp.float32)
    out2 = jax.block_until_ready(mlp_forward(x2, w1, b1, w2, b2, w3, b3))
    assert out2.shape == (260, num_classes)
    ref2 = ref_forward(x2, w1, b1, w2, b2, w3, b3)
    assert jnp.allclose(out2, ref2, atol=2e-2, rtol=2e-2), float(jnp.max(jnp.abs(out2 - ref2)))

    print("KERNEL_OK")
</pallas_src>

<mosaic_0001>
module attributes {stable_mosaic.version = 11 : i64} {
  func.func @mlp_kernel(%arg0: i32, %arg1: memref<8x32xf32, #tpu.memory_space<vmem>>, %arg2: memref<32x64xf32, #tpu.memory_space<vmem>>, %arg3: memref<1x64xf32, #tpu.memory_space<vmem>>, %arg4: memref<64x48xf32, #tpu.memory_space<vmem>>, %arg5: memref<1x48xf32, #tpu.memory_space<vmem>>, %arg6: memref<48x16xf32, #tpu.memory_space<vmem>>, %arg7: memref<1x16xf32, #tpu.memory_space<vmem>>, %arg8: memref<8x16xf32, #tpu.memory_space<vmem>>) attributes {dimension_semantics = [#tpu.dimension_semantics<parallel>], iteration_bounds = array<i64: 1>, scalar_prefetch = 0 : i64, scratch_operands = 0 : i64, tpu.core_type = #tpu.core_type<tc>, window_params = [{transform_indices = @transform_0, window_bounds = array<i64: 8, 32>}, {pipeline_mode = #tpu.pipeline_mode<synchronous>, transform_indices = @transform_1, window_bounds = array<i64: 32, 64>}, {pipeline_mode = #tpu.pipeline_mode<synchronous>, transform_indices = @transform_2, window_bounds = array<i64: 1, 64>}, {pipeline_mode = #tpu.pipeline_mode<synchronous>, transform_indices = @transform_3, window_bounds = array<i64: 64, 48>}, {pipeline_mode = #tpu.pipeline_mode<synchronous>, transform_indices = @transform_4, window_bounds = array<i64: 1, 48>}, {pipeline_mode = #tpu.pipeline_mode<synchronous>, transform_indices = @transform_5, window_bounds = array<i64: 48, 16>}, {pipeline_mode = #tpu.pipeline_mode<synchronous>, transform_indices = @transform_6, window_bounds = array<i64: 1, 16>}, {transform_indices = @transform_7, window_bounds = array<i64: 8, 16>}]} {
    %c0 = arith.constant 0 : index
    %c0_0 = arith.constant 0 : index
    %0 = vector.load %arg1[%c0, %c0_0] : memref<8x32xf32, #tpu.memory_space<vmem>>, vector<8x32xf32>
    %c0_1 = arith.constant 0 : index
    %c0_2 = arith.constant 0 : index
    %1 = vector.load %arg2[%c0_1, %c0_2] : memref<32x64xf32, #tpu.memory_space<vmem>>, vector<32x64xf32>
    %cst = arith.constant dense<0.000000e+00> : vector<8x64xf32>
    %2 = tpu.matmul %0, %1, %cst {dimension_numbers = #tpu.dot_dimension_numbers<[1], [0], [0], [1], [0, 0, 1, 1], [], []>} : vector<8x32xf32>, vector<32x64xf32>, vector<8x64xf32> -> vector<8x64xf32>
    %c0_3 = arith.constant 0 : index
    %c0_4 = arith.constant 0 : index
    %3 = vector.load %arg3[%c0_3, %c0_4] : memref<1x64xf32, #tpu.memory_space<vmem>>, vector<1x64xf32>
    %4 = vector.broadcast %3 : vector<1x64xf32> to vector<8x64xf32>
    %5 = arith.addf %2, %4 : vector<8x64xf32>
    %cst_5 = arith.constant 0.000000e+00 : f32
    %6 = vector.broadcast %cst_5 : f32 to vector<8x64xf32>
    %7 = arith.maximumf %5, %6 : vector<8x64xf32>
    %c0_6 = arith.constant 0 : index
    %c0_7 = arith.constant 0 : index
    %8 = vector.load %arg4[%c0_6, %c0_7] : memref<64x48xf32, #tpu.memory_space<vmem>>, vector<64x48xf32>
    %cst_8 = arith.constant dense<0.000000e+00> : vector<8x48xf32>
    %9 = tpu.matmul %7, %8, %cst_8 {dimension_numbers = #tpu.dot_dimension_numbers<[1], [0], [0], [1], [0, 0, 1, 1], [], []>} : vector<8x64xf32>, vector<64x48xf32>, vector<8x48xf32> -> vector<8x48xf32>
    %c0_9 = arith.constant 0 : index
    %c0_10 = arith.constant 0 : index
    %10 = vector.load %arg5[%c0_9, %c0_10] : memref<1x48xf32, #tpu.memory_space<vmem>>, vector<1x48xf32>
    %11 = vector.broadcast %10 : vector<1x48xf32> to vector<8x48xf32>
    %12 = arith.addf %9, %11 : vector<8x48xf32>
    %cst_11 = arith.constant 0.000000e+00 : f32
    %13 = vector.broadcast %cst_11 : f32 to vector<8x48xf32>
    %14 = arith.maximumf %12, %13 : vector<8x48xf32>
    %c0_12 = arith.constant 0 : index
    %c0_13 = arith.constant 0 : index
    %15 = vector.load %arg6[%c0_12, %c0_13] : memref<48x16xf32, #tpu.memory_space<vmem>>, vector<48x16xf32>
    %cst_14 = arith.constant dense<0.000000e+00> : vector<8x16xf32>
    %16 = tpu.matmul %14, %15, %cst_14 {dimension_numbers = #tpu.dot_dimension_numbers<[1], [0], [0], [1], [0, 0, 1, 1], [], []>} : vector<8x48xf32>, vector<48x16xf32>, vector<8x16xf32> -> vector<8x16xf32>
    %c0_15 = arith.constant 0 : index
    %c0_16 = arith.constant 0 : index
    %17 = vector.load %arg7[%c0_15, %c0_16] : memref<1x16xf32, #tpu.memory_space<vmem>>, vector<1x16xf32>
    %18 = vector.broadcast %17 : vector<1x16xf32> to vector<8x16xf32>
    %19 = arith.addf %16, %18 : vector<8x16xf32>
    %c0_17 = arith.constant 0 : index
    %c0_18 = arith.constant 0 : index
    %20 = vector.load %arg8[%c0_17, %c0_18] : memref<8x16xf32, #tpu.memory_space<vmem>>, vector<8x16xf32>
    tpu.vector_store %arg8[%c0_17, %c0_18], %19 {strides = array<i32>} : memref<8x16xf32, #tpu.memory_space<vmem>>, vector<8x16xf32>,
    return
  }
  func.func @transform_0(%arg0: i32) -> (i32, i32) {
    %c0_i32 = arith.constant 0 : i32
    %c0_i32_0 = arith.constant 0 : i32
    return %arg0, %c0_i32 : i32, i32
  }
  func.func @transform_1(%arg0: i32) -> (i32, i32) {
    %c0_i32 = arith.constant 0 : i32
    %c0_i32_0 = arith.constant 0 : i32
    %c0_i32_1 = arith.constant 0 : i32
    return %c0_i32, %c0_i32_0 : i32, i32
  }
  func.func @transform_2(%arg0: i32) -> (i32, i32) {
    %c0_i32 = arith.constant 0 : i32
    %c0_i32_0 = arith.constant 0 : i32
    %c0_i32_1 = arith.constant 0 : i32
    return %c0_i32, %c0_i32_0 : i32, i32
  }
  func.func @transform_3(%arg0: i32) -> (i32, i32) {
    %c0_i32 = arith.constant 0 : i32
    %c0_i32_0 = arith.constant 0 : i32
    %c0_i32_1 = arith.constant 0 : i32
    return %c0_i32, %c0_i32_0 : i32, i32
  }
  func.func @transform_4(%arg0: i32) -> (i32, i32) {
    %c0_i32 = arith.constant 0 : i32
    %c0_i32_0 = arith.constant 0 : i32
    %c0_i32_1 = arith.constant 0 : i32
    return %c0_i32, %c0_i32_0 : i32, i32
  }
  func.func @transform_5(%arg0: i32) -> (i32, i32) {
    %c0_i32 = arith.constant 0 : i32
    %c0_i32_0 = arith.constant 0 : i32
    %c0_i32_1 = arith.constant 0 : i32
    return %c0_i32, %c0_i32_0 : i32, i32
  }
  func.func @transform_6(%arg0: i32) -> (i32, i32) {
    %c0_i32 = arith.constant 0 : i32
    %c0_i32_0 = arith.constant 0 : i32
    %c0_i32_1 = arith.constant 0 : i32
    return %c0_i32, %c0_i32_0 : i32, i32
  }
  func.func @transform_7(%arg0: i32) -> (i32, i32) {
    %c0_i32 = arith.constant 0 : i32
    %c0_i32_0 = arith.constant 0 : i32
    return %arg0, %c0_i32 : i32, i32
  }
}

</mosaic_0001>

<llo_original>
// kernel: mlp_forward.1
$region0: #{mlp_forward.1}
  #allocation0 [shape = 'u32[]', space=smem, size = 0x4, offset = 0x4, fixed_abs, tag = 'smem constant byte address 0x4 - core index']
  #allocation1 [shape = 'u32[72,128]{1,0:T(1,128)}', space=vmem, size = 0x9000, scoped, tag = 'internal scratch']
  %s0 = inlined_call_operand.vmem [shape: f32[8,32], index: 0, kind: input, shape index: {}]
  %s1 = inlined_call_operand.vmem [shape: f32[32,64], index: 1, kind: input, shape index: {}]
  %s2 = inlined_call_operand.vmem [shape: f32[1,64], index: 2, kind: input, shape index: {}]
  %s3 = inlined_call_operand.vmem [shape: f32[64,48], index: 3, kind: input, shape index: {}]
  %s4 = inlined_call_operand.vmem [shape: f32[1,48], index: 4, kind: input, shape index: {}]
  %s5 = inlined_call_operand.vmem [shape: f32[48,16], index: 5, kind: input, shape index: {}]
  %s6 = inlined_call_operand.vmem [shape: f32[1,16], index: 6, kind: input, shape index: {}]
  %s7 = inlined_call_operand.hbm [shape: f32[8,16], index: 7, kind: output, shape index: {}]
  %s8 = sld [smem:[#allocation0]]
  $region38: #{mlp_forward.1} parent=0
    _
  %s10 = ssub.s32 1, %s8
  %s11 = scalar_select 0, %s10, %s8
  $region1: #{mlp_forward.1} parent=0
    #allocation2 [shape = 'u8[4096]{0}', space=vmem, size = 0x1000, scoped, tag = 'output window, operand 0, single buffered']
    #allocation3 [shape = 's32[1]{0}', space=sflag, size = 0x4, scoped, tag = 'scoped memory for mlp_forward.1']
    %12 = vsyncpa [#allocation3], 0
    // Predicated region
    $region2: #{mlp_forward.1} parent=1 // pred_check
      _
    $region3: #{mlp_forward.1} parent=1 // pred_check_branch
      %14 = sbr.rel (0) target = $region5
    $region4: #{mlp_forward.1} parent=1 // pred_region
      _
    $region5: #{mlp_forward.1} parent=1 // pred_fallthru
      _
    // Predicated region
    $region6: #{mlp_forward.1} parent=1 // pred_check
      _
    $region7: #{mlp_forward.1} parent=1 // pred_check_branch
      %16 = sbr.rel (0) target = $region9
    $region8: #{mlp_forward.1} parent=1 // pred_region
      _
    $region9: #{mlp_forward.1} parent=1 // pred_fallthru
      _
    // Predicated region
    $region10: #{mlp_forward.1} parent=1 // pred_check
      _
    $region11: #{mlp_forward.1} parent=1 // pred_check_branch
      %18 = sbr.rel (0) target = $region13
    $region12: #{mlp_forward.1} parent=1 // pred_region
      _
    $region13: #{mlp_forward.1} parent=1 // pred_fallthru
      _
    // Predicated region
    $region14: #{mlp_forward.1} parent=1 // pred_check
      _
    $region15: #{mlp_forward.1} parent=1 // pred_check_branch
      %20 = sbr.rel (0) target = $region17
    $region16: #{mlp_forward.1} parent=1 // pred_region
      _
    $region17: #{mlp_forward.1} parent=1 // pred_fallthru
      _
    // Predicated region
    $region18: #{mlp_forward.1} parent=1 // pred_check
      _
    $region19: #{mlp_forward.1} parent=1 // pred_check_branch
      %22 = sbr.rel (0) target = $region21
    $region20: #{mlp_forward.1} parent=1 // pred_region
      _
    $region21: #{mlp_forward.1} parent=1 // pred_fallthru
      _
    // Predicated region
    $region22: #{mlp_forward.1} parent=1 // pred_check
      _
    $region23: #{mlp_forward.1} parent=1 // pred_check_branch
      %24 = sbr.rel (0) target = $region25
    $region24: #{mlp_forward.1} parent=1 // pred_region
      _
    $region25: #{mlp_forward.1} parent=1 // pred_fallthru
      _
    // Predicated region
    $region26: #{mlp_forward.1} parent=1 // pred_check
      _
    $region27: #{mlp_forward.1} parent=1 // pred_check_branch
      %26 = sbr.rel (0) target = $region29
    $region28: #{mlp_forward.1} parent=1 // pred_region
      _
    $region29: #{mlp_forward.1} parent=1 // pred_fallthru
      _
    %v27 = vld [vmem:[%s0] sm:$0xff]
    %v28 = vld [vmem:[%s1] sm:$0xff]
    %v29 = vld [vmem:[%s1 + $0x8] sm:$0xff]
    %v30 = vld [vmem:[%s1 + $0x10] sm:$0xff]
    %v31 = vld [vmem:[%s1 + $0x18] sm:$0xff]
    %v32 = vld [vmem:[%s2] sm:$0x1]
    %v34 = vperm.slane %v32, 0
    %vm36 = vcmask 261120
    %v38 = vsel %vm36, %v27, 0
    %40 = vmatpush.msra.mxu0 0.0
    %41 = vmatpush.msra.mxu0 0.0
    %42 = vmatpush.msra.mxu0 0.0
    %43 = vmatpush.msra.mxu0 0.0
    %44 = vmatpush.msra.mxu0 0.0
    %45 = vmatpush.msra.mxu0 0.0
    %46 = vmatpush.msra.mxu0 0.0
    %47 = vmatpush.msra.mxu0 0.0
    %48 = vmatpush.msra.mxu0 0.0
    %49 = vmatpush.msra.mxu0 0.0
    %50 = vmatpush.msra.mxu0 0.0
    %51 = vmatpush.msra.mxu0 0.0
    %52 = vmatpush.msra.mxu0 %v31
    %53 = vmatpush.msra.mxu0 %v30
    %54 = vmatpush.msra.mxu0 %v29
    %55 = vmatpush.msra.mxu0 %v28
    %56 = vmatmul.f32.gmra.mxu0 %v38
    %v57 = vpop.f32.mrf.mxu0
    %v58 = vadd.f32 %v34, %v57
    %59 = vdwg.mxu0
    %v60 = vmax.f32 %v58, 0.0
    %v61 = vld [vmem:[%s3] sm:$0xff]
    %v62 = vld [vmem:[%s3 + $0x8] sm:$0xff]
    %v63 = vld [vmem:[%s3 + $0x10] sm:$0xff]
    %v64 = vld [vmem:[%s3 + $0x18] sm:$0xff]
    %v65 = vld [vmem:[%s3 + $0x20] sm:$0xff]
    %v66 = vld [vmem:[%s3 + $0x28] sm:$0xff]
    %v67 = vld [vmem:[%s3 + $0x30] sm:$0xff]
    %v68 = vld [vmem:[%s3 + $0x38] sm:$0xff]
    %v69 = vld [vmem:[%s4] sm:$0x1]
    %v71 = vperm.slane %v69, 0
    %vm73 = vcmask 523264
    %v75 = vsel %vm73, %v60, 0
    %77 = vmatpush.msra.mxu0 0.0
    %78 = vmatpush.msra.mxu0 0.0
    %79 = vmatpush.msra.mxu0 0.0
    %80 = vmatpush.msra.mxu0 0.0
    %81 = vmatpush.msra.mxu0 0.0
    %82 = vmatpush.msra.mxu0 0.0
    %83 = vmatpush.msra.mxu0 0.0
    %84 = vmatpush.msra.mxu0 0.0
    %85 = vmatpush.msra.mxu0 %v68
    %86 = vmatpush.msra.mxu0 %v67
    %87 = vmatpush.msra.mxu0 %v66
    %88 = vmatpush.msra.mxu0 %v65
    %89 = vmatpush.msra.mxu0 %v64
    %90 = vmatpush.msra.mxu0 %v63
    %91 = vmatpush.msra.mxu0 %v62
    %92 = vmatpush.msra.mxu0 %v61
    %93 = vmatmul.f32.gmra.mxu0 %v75
    %v94 = vpop.f32.mrf.mxu0
    %v95 = vadd.f32 %v71, %v94
    %96 = vdwg.mxu0
    %v97 = vmax.f32 %v95, 0.0
    %v98 = vld [vmem:[%s5] sm:$0xff]
    %v99 = vld [vmem:[%s5 + $0x8] sm:$0xff]
    %v100 = vld [vmem:[%s5 + $0x10] sm:$0xff]
    %v101 = vld [vmem:[%s5 + $0x18] sm:$0xff]
    %v102 = vld [vmem:[%s5 + $0x20] sm:$0xff]
    %v103 = vld [vmem:[%s5 + $0x28] sm:$0xff]
    %v104 = vld [vmem:[%s6] sm:$0x1]
    %v106 = vperm.slane %v104, 0
    %vm108 = vcmask 392192
    %v110 = vsel %vm108, %v97, 0
    %112 = vmatpush.msra.mxu0 0.0
    %113 = vmatpush.msra.mxu0 0.0
    %114 = vmatpush.msra.mxu0 0.0
    %115 = vmatpush.msra.mxu0 0.0
    %116 = vmatpush.msra.mxu0 0.0
    %117 = vmatpush.msra.mxu0 0.0
    %118 = vmatpush.msra.mxu0 0.0
    %119 = vmatpush.msra.mxu0 0.0
    %120 = vmatpush.msra.mxu0 0.0
    %121 = vmatpush.msra.mxu0 0.0
    %122 = vmatpush.msra.mxu0 %v103
    %123 = vmatpush.msra.mxu0 %v102
    %124 = vmatpush.msra.mxu0 %v101
    %125 = vmatpush.msra.mxu0 %v100
    %126 = vmatpush.msra.mxu0 %v99
    %127 = vmatpush.msra.mxu0 %v98
    %128 = vmatmul.f32.gmra.mxu0 %v110
    %v129 = vpop.f32.mrf.mxu0
    %v130 = vadd.f32 %v106, %v129
    %131 = vdwg.mxu0
    %vm132 = vcmask 130048
    %133 = vst.msk [vmem:[#allocation2] sm:$0xff] %vm132, %v130
    // Predicated region
    $region30: #{mlp_forward.1} parent=1 // pred_check
      _
    $region31: #{mlp_forward.1} parent=1 // pred_check_branch
      %135 = sbr.rel (0) target = $region33
    $region32: #{mlp_forward.1} parent=1 // pred_region
      %137 = vsyncadd [#allocation3], 0
      %s139 = sshll.u32 [#allocation2], 4
      %s140 = int_to_ptr.vmem [resolvable:$true] %s139
      %s141 = sshll.u32 %s7, 4
      %s142 = int_to_ptr.hbm [resolvable:$true] %s141
      %144 = dma.vmem_to_hbm [thread:$0]  %s140, 128, %s142, [#allocation3]
    $region33: #{mlp_forward.1} parent=1 // pred_fallthru
      _
    // Predicated region
    $region34: #{mlp_forward.1} parent=1 // pred_check
      _
    $region35: #{mlp_forward.1} parent=1 // pred_check_branch
      %146 = sbr.rel (0) target = $region37
    $region36: #{mlp_forward.1} parent=1 // pred_region
      %148 = dma.done [#allocation3], 128
    $region37: #{mlp_forward.1} parent=1 // pred_fallthru
      _
    %149 = vsyncpa [#allocation3], 1

</llo_original>
